<compile_context>
chip_gen: v7x
topology: tpu7x:2x2x1
jax: 0.10.0
libtpu: 0.0.40
codegen_flags: <defaults>
</compile_context>

<pallas_src>
import functools

import jax
import jax.numpy as jnp
from jax.experimental import pallas as pl
from jax.experimental.pallas import tpu as pltpu

LANE = 128      # vreg lane width (last-dim alignment target)
SUBLANE = 8     # vreg sublane width (second-to-last-dim alignment target)


def _round_up(x, m):
    return (x + m - 1) // m * m


def _mlp_kernel(x_ref, w1t_ref, b1_ref, w2t_ref, b2_ref, o_ref, acc_ref):
    """Grid = (batch_tiles, vocab_slabs).

    fc1 streams vocab slabs of x / W1^T over the trailing reduction axis into
    an f32 VMEM accumulator; bias + ReLU + fc2 + bias + store run once per
    batch tile on the last slab.
    """
    k = pl.program_id(1)

    @pl.when(k == 0)
    def _():
        acc_ref[...] = jnp.zeros_like(acc_ref)

    # fc1 partial product: cast the f32 activation slab to the (bf16) weight
    # dtype so the MXU runs its native low-precision path; accumulate in f32.
    acc_ref[...] += jnp.dot(
        x_ref[...].astype(w1t_ref.dtype), w1t_ref[...],
        preferred_element_type=jnp.float32)

    @pl.when(k == pl.num_programs(1) - 1)
    def _():
        # Epilogue entirely on the f32 accumulator (safe on v5e: no bf16 VPU).
        h = jnp.maximum(acc_ref[...] + b1_ref[...], 0.0)            # (TB, Hp)
        y = jnp.dot(h.astype(w2t_ref.dtype), w2t_ref[...],
                    preferred_element_type=jnp.float32)             # (TB, Op)
        o_ref[...] = (y + b2_ref[...]).astype(o_ref.dtype)          # lane-dense


def prepare_params(w1, b1, w2, b2, *, weight_dtype=jnp.bfloat16, block_v=512):
    """One-time conversion of PyTorch-layout params into the kernel layout.

    Weights are pre-transposed to (in, out), zero-padded so lane (last) dims
    are multiples of 128, the vocab dim is zero-padded to a multiple of the
    reduction slab, and cast to `weight_dtype` (bf16 by default).  Biases stay
    f32 (they are applied to the f32 accumulator).  Zero padding keeps the math
    identical: padded hidden columns see bias 0 -> ReLU(0) = 0, and the
    corresponding rows of W2^T are zero.
    """
    H, V = w1.shape
    O, _ = w2.shape
    Hp = _round_up(H, LANE)
    Op = _round_up(O, LANE)
    block_v = _round_up(block_v, LANE)
    tv = min(_round_up(V, LANE), block_v)       # vocab reduction slab
    Vp = _round_up(V, tv)

    w1t = jnp.zeros((Vp, Hp), weight_dtype).at[:V, :H].set(w1.T.astype(weight_dtype))
    b1p = jnp.zeros((1, Hp), jnp.float32).at[0, :H].set(b1.astype(jnp.float32))
    w2t = jnp.zeros((Hp, Op), weight_dtype).at[:H, :O].set(w2.T.astype(weight_dtype))
    b2p = jnp.zeros((1, Op), jnp.float32).at[0, :O].set(b2.astype(jnp.float32))
    return (w1t, b1p, w2t, b2p), O


@functools.partial(jax.jit, static_argnames=("out_features", "block_b", "block_v"))
def two_layer_nn(x, w1t, b1p, w2t, b2p, *, out_features, block_b=256, block_v=512):
    """x: (B, V) f32; params in kernel layout from prepare_params().
    Returns (B, out_features) f32."""
    B, V = x.shape
    Vp, Hp = w1t.shape
    Hw, Op = w2t.shape
    assert Hp == Hw and Vp >= V

    # Pad the feature dim up to the weights' padded vocab (zero columns match
    # the zero weight rows -> contribute nothing).
    if Vp != V:
        x = jnp.pad(x, ((0, 0), (0, Vp - V)))

    # Batch tile: force a multiple of 8 sublanes (robust to odd block_b), cap
    # at block_b rows per program (default 256 -> fills the 256-wide MXU).
    block_b = _round_up(block_b, SUBLANE)
    TB = min(_round_up(B, SUBLANE), block_b)
    assert TB % SUBLANE == 0
    Bp = _round_up(B, TB)
    if Bp != B:
        x = jnp.pad(x, ((0, Bp - B), (0, 0)))   # zero rows, sliced off below

    # Vocab (reduction) slab: lane-multiple, must divide the padded vocab.
    block_v = _round_up(block_v, LANE)
    TV = block_v if (Vp > block_v and Vp % block_v == 0) else Vp
    assert Vp % TV == 0 and TV % LANE == 0, (
        "block_v mismatch between prepare_params() and two_layer_nn()")

    n_b = Bp // TB
    n_k = Vp // TV
    grid = (n_b, n_k)

    xsz = x.dtype.itemsize
    wsz = w1t.dtype.itemsize

    # Rough per-core VMEM need (double buffers for streamed blocks + scratch),
    # used to pick an explicit scoped-VMEM limit instead of the tiny defaults.
    vmem_need = (
        2 * TB * TV * xsz                      # x slabs (double-buffered)
        + 2 * TV * Hp * wsz                    # W1 slabs (double-buffered)
        + 2 * (Hp * 4 + Hp * Op * wsz + Op * 4)  # constant-index b1/W2/b2 blocks
        + 2 * TB * Op * xsz                    # output tile
        + TB * Hp * 4                          # f32 accumulator scratch
    )
    try:
        vmem_cap = int(pltpu.get_tpu_info().vmem_capacity_bytes)
    except Exception:                          # pragma: no cover - conservative fallback
        vmem_cap = 64 * 1024 * 1024            # v7x per-TC VMEM
    vmem_limit = int(max(min(4 * vmem_need, (3 * vmem_cap) // 4), 16 * 1024 * 1024))

    flops = 2 * Bp * (Vp * Hp + Hp * Op)
    bytes_accessed = (
        Bp * Vp * xsz          # activations in
        + Vp * Hp * wsz        # W1 (bf16)
        + Hp * 4               # b1 (f32)
        + Hp * Op * wsz        # W2 (bf16)
        + Op * 4               # b2 (f32)
        + Bp * Op * xsz        # output
    )

    # Shard batch tiles across TensorCores only when weights get reused enough
    # to amortize each core streaming its own copy (v7x-only effect).
    batch_sem = "parallel" if n_b >= 4 else "arbitrary"

    out = pl.pallas_call(
        _mlp_kernel,
        out_shape=jax.ShapeDtypeStruct((Bp, Op), x.dtype),
        grid=grid,
        in_specs=[
            pl.BlockSpec((TB, TV), lambda i, k: (i, k)),   # x: batch x vocab-slab tiles
            pl.BlockSpec((TV, Hp), lambda i, k: (k, 0)),   # W1^T: streamed vocab slabs
            pl.BlockSpec((1, Hp), lambda i, k: (0, 0)),    # b1: VMEM-resident
            pl.BlockSpec((Hp, Op), lambda i, k: (0, 0)),   # W2^T: VMEM-resident
            pl.BlockSpec((1, Op), lambda i, k: (0, 0)),    # b2: VMEM-resident
        ],
        out_specs=pl.BlockSpec((TB, Op), lambda i, k: (i, 0)),
        scratch_shapes=[pltpu.VMEM((TB, Hp), jnp.float32)],   # fc1 accumulator
        compiler_params=pltpu.CompilerParams(
            dimension_semantics=(batch_sem, "arbitrary"),
            vmem_limit_bytes=vmem_limit,
        ),
        cost_estimate=pl.CostEstimate(
            flops=flops, transcendentals=0, bytes_accessed=bytes_accessed),
    )(x, w1t, b1p, w2t, b2p)

    # Strip batch padding and the lane-padded output columns.
    return out[:B, :out_features]


def init_params(key, vocab_size, hidden_size, output_size, dtype=jnp.float32):
    """Deterministic init matching the PyTorch module's __init__:
    xavier_uniform_ weights, default nn.Linear bias init U(-1/sqrt(fan_in), 1/sqrt(fan_in))."""
    k1, k2, k3, k4 = jax.random.split(key, 4)

    def xavier_uniform(k, fan_out, fan_in):
        bound = jnp.sqrt(6.0 / (fan_in + fan_out))
        return jax.random.uniform(k, (fan_out, fan_in), dtype, -bound, bound)

    def bias_init(k, fan_out, fan_in):
        bound = 1.0 / jnp.sqrt(fan_in)
        return jax.random.uniform(k, (fan_out,), dtype, -bound, bound)

    w1 = xavier_uniform(k1, hidden_size, vocab_size)
    b1 = bias_init(k2, hidden_size, vocab_size)
    w2 = xavier_uniform(k3, output_size, hidden_size)
    b2 = bias_init(k4, output_size, hidden_size)
    return w1, b1, w2, b2


if __name__ == "__main__":
    # Small, module-consistent shapes (bag-of-words input: batch of BoW vectors).
    batch = 8
    vocab_size = 256
    hidden_size = 100   # module default
    output_size = 20    # module default

    key = jax.random.PRNGKey(0)
    kx, kp = jax.random.split(key)
    x = jax.random.uniform(kx, (batch, vocab_size), jnp.float32)  # BoW counts/features
    w1, b1, w2, b2 = init_params(kp, vocab_size, hidden_size, output_size)

    # One-time param prep (pre-transpose + lane-pad + bf16 cast) — NOT per call.
    (w1t, b1p, w2t, b2p), out_features = prepare_params(w1, b1, w2, b2)

    out = two_layer_nn(x, w1t, b1p, w2t, b2p, out_features=out_features)
    out = jax.block_until_ready(out)

    # Pure-JAX f32 reference of the forward semantics (original PyTorch layout).
    ref = jnp.maximum(x @ w1.T + b1, 0.0) @ w2.T + b2
    assert out.shape == (batch, output_size)
    # bf16 weights -> looser tolerance than pure f32 (expected precision change).
    assert jnp.allclose(out, ref, atol=5e-2, rtol=5e-2), float(jnp.max(jnp.abs(out - ref)))

    print("KERNEL_OK")
</pallas_src>

<mosaic_0001>
module attributes {stable_mosaic.version = 11 : i64} {
  func.func @_mlp_kernel(%arg0: i32, %arg1: i32, %arg2: memref<8x256xf32, #tpu.memory_space<vmem>>, %arg3: memref<256x128xbf16, #tpu.memory_space<vmem>>, %arg4: memref<1x128xf32, #tpu.memory_space<vmem>>, %arg5: memref<128x128xbf16, #tpu.memory_space<vmem>>, %arg6: memref<1x128xf32, #tpu.memory_space<vmem>>, %arg7: memref<8x128xf32, #tpu.memory_space<vmem>>, %arg8: memref<8x128xf32, #tpu.memory_space<vmem>>) attributes {dimension_semantics = [#tpu.dimension_semantics<arbitrary>, #tpu.dimension_semantics<arbitrary>], iteration_bounds = array<i64: 1, 1>, scalar_prefetch = 0 : i64, scratch_operands = 1 : i64, tpu.core_type = #tpu.core_type<tc>, window_params = [{transform_indices = @transform_0, window_bounds = array<i64: 8, 256>}, {transform_indices = @transform_1, window_bounds = array<i64: 256, 128>}, {pipeline_mode = #tpu.pipeline_mode<synchronous>, transform_indices = @transform_2, window_bounds = array<i64: 1, 128>}, {pipeline_mode = #tpu.pipeline_mode<synchronous>, transform_indices = @transform_3, window_bounds = array<i64: 128, 128>}, {pipeline_mode = #tpu.pipeline_mode<synchronous>, transform_indices = @transform_4, window_bounds = array<i64: 1, 128>}, {transform_indices = @transform_5, window_bounds = array<i64: 8, 128>}]} {
    %c0_i32 = arith.constant 0 : i32
    %0 = arith.cmpi eq, %arg1, %c0_i32 : i32
    %1 = arith.extui %0 : i1 to i32
    %c0_i32_0 = arith.constant 0 : i32
    %2 = arith.cmpi ne, %1, %c0_i32_0 : i32
    scf.if %2 {
      %cst_10 = arith.constant 0.000000e+00 : f32
      %13 = vector.broadcast %cst_10 : f32 to vector<8x128xf32>
      %c0_11 = arith.constant 0 : index
      %c0_12 = arith.constant 0 : index
      %14 = vector.load %arg8[%c0_11, %c0_12] : memref<8x128xf32, #tpu.memory_space<vmem>>, vector<8x128xf32>
      tpu.vector_store %arg8[%c0_11, %c0_12], %13 {strides = array<i32>} : memref<8x128xf32, #tpu.memory_space<vmem>>, vector<8x128xf32>,
    } else {
    }
    %c0 = arith.constant 0 : index
    %c0_1 = arith.constant 0 : index
    %3 = vector.load %arg8[%c0, %c0_1] : memref<8x128xf32, #tpu.memory_space<vmem>>, vector<8x128xf32>
    %c0_2 = arith.constant 0 : index
    %c0_3 = arith.constant 0 : index
    %4 = vector.load %arg2[%c0_2, %c0_3] : memref<8x256xf32, #tpu.memory_space<vmem>>, vector<8x256xf32>
    %5 = arith.truncf %4 : vector<8x256xf32> to vector<8x256xbf16>
    %c0_4 = arith.constant 0 : index
    %c0_5 = arith.constant 0 : index
    %6 = vector.load %arg3[%c0_4, %c0_5] : memref<256x128xbf16, #tpu.memory_space<vmem>>, vector<256x128xbf16>
    %cst = arith.constant dense<0.000000e+00> : vector<8x128xf32>
    %7 = tpu.matmul %5, %6, %cst {dimension_numbers = #tpu.dot_dimension_numbers<[1], [0], [0], [1], [0, 0, 1, 1], [], []>} : vector<8x256xbf16>, vector<256x128xbf16>, vector<8x128xf32> -> vector<8x128xf32>
    %8 = arith.addf %3, %7 : vector<8x128xf32>
    %c0_6 = arith.constant 0 : index
    %c0_7 = arith.constant 0 : index
    %9 = vector.load %arg8[%c0_6, %c0_7] : memref<8x128xf32, #tpu.memory_space<vmem>>, vector<8x128xf32>
    tpu.vector_store %arg8[%c0_6, %c0_7], %8 {strides = array<i32>} : memref<8x128xf32, #tpu.memory_space<vmem>>, vector<8x128xf32>,
    %c0_i32_8 = arith.constant 0 : i32
    %10 = arith.cmpi eq, %arg1, %c0_i32_8 : i32
    %11 = arith.extui %10 : i1 to i32
    %c0_i32_9 = arith.constant 0 : i32
    %12 = arith.cmpi ne, %11, %c0_i32_9 : i32
    scf.if %12 {
      %c0_10 = arith.constant 0 : index
      %c0_11 = arith.constant 0 : index
      %13 = vector.load %arg8[%c0_10, %c0_11] : memref<8x128xf32, #tpu.memory_space<vmem>>, vector<8x128xf32>
      %c0_12 = arith.constant 0 : index
      %c0_13 = arith.constant 0 : index
      %14 = vector.load %arg4[%c0_12, %c0_13] : memref<1x128xf32, #tpu.memory_space<vmem>>, vector<1x128xf32>
      %15 = vector.broadcast %14 : vector<1x128xf32> to vector<8x128xf32>
      %16 = arith.addf %13, %15 : vector<8x128xf32>
      %cst_14 = arith.constant 0.000000e+00 : f32
      %17 = vector.broadcast %cst_14 : f32 to vector<8x128xf32>
      %18 = arith.maximumf %16, %17 : vector<8x128xf32>
      %19 = arith.truncf %18 : vector<8x128xf32> to vector<8x128xbf16>
      %c0_15 = arith.constant 0 : index
      %c0_16 = arith.constant 0 : index
      %20 = vector.load %arg5[%c0_15, %c0_16] : memref<128x128xbf16, #tpu.memory_space<vmem>>, vector<128x128xbf16>
      %cst_17 = arith.constant dense<0.000000e+00> : vector<8x128xf32>
      %21 = tpu.matmul %19, %20, %cst_17 {dimension_numbers = #tpu.dot_dimension_numbers<[1], [0], [0], [1], [0, 0, 1, 1], [], []>} : vector<8x128xbf16>, vector<128x128xbf16>, vector<8x128xf32> -> vector<8x128xf32>
      %c0_18 = arith.constant 0 : index
      %c0_19 = arith.constant 0 : index
      %22 = vector.load %arg6[%c0_18, %c0_19] : memref<1x128xf32, #tpu.memory_space<vmem>>, vector<1x128xf32>
      %23 = vector.broadcast %22 : vector<1x128xf32> to vector<8x128xf32>
      %24 = arith.addf %21, %23 : vector<8x128xf32>
      %c0_20 = arith.constant 0 : index
      %c0_21 = arith.constant 0 : index
      %25 = vector.load %arg7[%c0_20, %c0_21] : memref<8x128xf32, #tpu.memory_space<vmem>>, vector<8x128xf32>
      tpu.vector_store %arg7[%c0_20, %c0_21], %24 {strides = array<i32>} : memref<8x128xf32, #tpu.memory_space<vmem>>, vector<8x128xf32>,
    } else {
    }
    return
  }
  func.func @transform_0(%arg0: i32, %arg1: i32) -> (i32, i32) {
    %c0_i32 = arith.constant 0 : i32
    return %arg0, %arg1 : i32, i32
  }
  func.func @transform_1(%arg0: i32, %arg1: i32) -> (i32, i32) {
    %c0_i32 = arith.constant 0 : i32
    %c0_i32_0 = arith.constant 0 : i32
    return %arg1, %c0_i32 : i32, i32
  }
  func.func @transform_2(%arg0: i32, %arg1: i32) -> (i32, i32) {
    %c0_i32 = arith.constant 0 : i32
    %c0_i32_0 = arith.constant 0 : i32
    %c0_i32_1 = arith.constant 0 : i32
    return %c0_i32, %c0_i32_0 : i32, i32
  }
  func.func @transform_3(%arg0: i32, %arg1: i32) -> (i32, i32) {
    %c0_i32 = arith.constant 0 : i32
    %c0_i32_0 = arith.constant 0 : i32
    %c0_i32_1 = arith.constant 0 : i32
    return %c0_i32, %c0_i32_0 : i32, i32
  }
  func.func @transform_4(%arg0: i32, %arg1: i32) -> (i32, i32) {
    %c0_i32 = arith.constant 0 : i32
    %c0_i32_0 = arith.constant 0 : i32
    %c0_i32_1 = arith.constant 0 : i32
    return %c0_i32, %c0_i32_0 : i32, i32
  }
  func.func @transform_5(%arg0: i32, %arg1: i32) -> (i32, i32) {
    %c0_i32 = arith.constant 0 : i32
    %c0_i32_0 = arith.constant 0 : i32
    return %arg0, %c0_i32 : i32, i32
  }
}

</mosaic_0001>

<llo_original>
// kernel: two_layer_nn.1
$region0: #{two_layer_nn.1}
  #allocation0 [shape = 'u32[]', space=smem, size = 0x4, offset = 0x4, fixed_abs, tag = 'smem constant byte address 0x4 - core index']
  #allocation1 [shape = 'u32[144,128]{1,0:T(1,128)}', space=vmem, size = 0x12000, scoped, tag = 'internal scratch']
  #allocation2 [shape = 'f32[8,128]{1,0:T(8,128)}', space=vmem, size = 0x1000, scoped, tag = 'scratch operand']
  %s0 = inlined_call_operand.hbm [shape: f32[8,256], index: 0, kind: input, shape index: {}]
  %s1 = inlined_call_operand.hbm [shape: bf16[256,128], index: 1, kind: input, shape index: {}]
  %s2 = inlined_call_operand.vmem [shape: f32[1,128], index: 2, kind: input, shape index: {}]
  %s3 = inlined_call_operand.hbm [shape: bf16[128,128], index: 3, kind: input, shape index: {}]
  %s4 = inlined_call_operand.vmem [shape: f32[1,128], index: 4, kind: input, shape index: {}]
  %s5 = inlined_call_operand.hbm [shape: f32[8,128], index: 5, kind: output, shape index: {}]
  %s6 = sld [smem:[#allocation0]]
  $region50: #{two_layer_nn.1} parent=0
    _
  %s8 = ssub.s32 1, %s6
  %s9 = scalar_select 0, %s8, %s6
  $region1: #{two_layer_nn.1} parent=0
    #allocation3 [shape = 'u8[8192]{0}', space=vmem, size = 0x2000, scoped, tag = 'input window, operand 0, single buffered']
    #allocation4 [shape = 's32[1]{0}', space=sflag, size = 0x4, scoped, tag = 'scoped memory for two_layer_nn.1']
    #allocation5 [shape = 's32[1]{0}', space=sflag, size = 0x4, scoped, tag = 'scoped memory for two_layer_nn.1']
    #allocation6 [shape = 'u8[65536]{0}', space=vmem, size = 0x10000, scoped, tag = 'input window, operand 1, single buffered']
    #allocation7 [shape = 's32[1]{0}', space=sflag, size = 0x4, scoped, tag = 'scoped memory for two_layer_nn.1']
    #allocation8 [shape = 'u8[32768]{0}', space=vmem, size = 0x8000, scoped, tag = 'input window, operand 3, single buffered']
    #allocation9 [shape = 'u8[4096]{0}', space=vmem, size = 0x1000, scoped, tag = 'output window, operand 0, single buffered']
    %10 = vsyncpa [#allocation4], 0
    %11 = vsyncpa [#allocation7], 0
    %12 = vsyncpa [#allocation5], 0
    // Predicated region
    $region2: #{two_layer_nn.1} parent=1 // pred_check
      _
    $region3: #{two_layer_nn.1} parent=1 // pred_check_branch
      %14 = sbr.rel (0) target = $region5
    $region4: #{two_layer_nn.1} parent=1 // pred_region
      %s16 = ssub.s32 256, 256
      %17 = vsyncadd [#allocation4], %s16
      %s19 = sshll.u32 [#allocation3], 4
      %s20 = int_to_ptr.vmem [resolvable:$true] %s19
      %22 = dma.hbm_to_vmem [thread:$0]  %s0, 256, %s20, [#allocation4]
    $region5: #{two_layer_nn.1} parent=1 // pred_fallthru
      _
    // Predicated region
    $region6: #{two_layer_nn.1} parent=1 // pred_check
      _
    $region7: #{two_layer_nn.1} parent=1 // pred_check_branch
      %24 = sbr.rel (0) target = $region9
    $region8: #{two_layer_nn.1} parent=1 // pred_region
      %s26 = ssub.s32 2048, 2048
      %27 = vsyncadd [#allocation7], %s26
      %s28 = sshll.u32 [#allocation6], 4
      %s29 = int_to_ptr.vmem [resolvable:$true] %s28
      %34 = dma.hbm_to_vmem [thread:$0]  %s1, 2048, %s29, [#allocation7], 64, 64, 4
    $region9: #{two_layer_nn.1} parent=1 // pred_fallthru
      _
    // Predicated region
    $region10: #{two_layer_nn.1} parent=1 // pred_check
      _
    $region11: #{two_layer_nn.1} parent=1 // pred_check_branch
      %36 = sbr.rel (0) target = $region13
    $region12: #{two_layer_nn.1} parent=1 // pred_region
      _
    $region13: #{two_layer_nn.1} parent=1 // pred_fallthru
      _
    // Predicated region
    $region14: #{two_layer_nn.1} parent=1 // pred_check
      _
    $region15: #{two_layer_nn.1} parent=1 // pred_check_branch
      %38 = sbr.rel (0) target = $region17
    $region16: #{two_layer_nn.1} parent=1 // pred_region
      %s40 = ssub.s32 1024, 1024
      %41 = vsyncadd [#allocation7], %s40
      %s42 = sshll.u32 [#allocation8], 4
      %s43 = int_to_ptr.vmem [resolvable:$true] %s42
      %48 = dma.hbm_to_vmem [thread:$0]  %s3, 1024, %s43, [#allocation7], 64, 64, 4
    $region17: #{two_layer_nn.1} parent=1 // pred_fallthru
      _
    // Predicated region
    $region18: #{two_layer_nn.1} parent=1 // pred_check
      _
    $region19: #{two_layer_nn.1} parent=1 // pred_check_branch
      %50 = sbr.rel (0) target = $region21
    $region20: #{two_layer_nn.1} parent=1 // pred_region
      _
    $region21: #{two_layer_nn.1} parent=1 // pred_fallthru
      _
    // Predicated region
    $region22: #{two_layer_nn.1} parent=1 // pred_check
      _
    $region23: #{two_layer_nn.1} parent=1 // pred_check_branch
      %52 = sbr.rel (0) target = $region25
    $region24: #{two_layer_nn.1} parent=1 // pred_region
      %53 = dma.done [#allocation4], 256
    $region25: #{two_layer_nn.1} parent=1 // pred_fallthru
      _
    // Predicated region
    $region26: #{two_layer_nn.1} parent=1 // pred_check
      _
    $region27: #{two_layer_nn.1} parent=1 // pred_check_branch
      %55 = sbr.rel (0) target = $region29
    $region28: #{two_layer_nn.1} parent=1 // pred_region
      %56 = dma.done [#allocation7], 2048
    $region29: #{two_layer_nn.1} parent=1 // pred_fallthru
      _
    // Predicated region
    $region30: #{two_layer_nn.1} parent=1 // pred_check
      _
    $region31: #{two_layer_nn.1} parent=1 // pred_check_branch
      %58 = sbr.rel (0) target = $region33
    $region32: #{two_layer_nn.1} parent=1 // pred_region
      %59 = dma.done [#allocation7], 1024
    $region33: #{two_layer_nn.1} parent=1 // pred_fallthru
      _
    %p61 = scmp.eq.s32.totalorder 0, 0
    // Predicated region
    $region34: #{two_layer_nn.1} parent=1 // pred_check
      %p62 = pneg %p61
    $region35: #{two_layer_nn.1} parent=1 // pred_check_branch
      %64 = sbr.rel (%p62) target = $region37
    $region36: #{two_layer_nn.1} parent=1 // pred_region
      %65 = vst [vmem:[#allocation2] sm:$0xff] 0.0
    $region37: #{two_layer_nn.1} parent=1 // pred_fallthru
      _
    %v66 = vld [vmem:[#allocation2] sm:$0xff]
    %v67 = vld [vmem:[#allocation3] sm:$0xff]
    %v68 = vld [vmem:[#allocation3 + $0x8] sm:$0xff]
    %v69 = vpack.c.bf16 %v67, %v67
    %v70 = vpack.c.bf16 %v68, %v68
    %v71 = vld [vmem:[#allocation6] sm:$0xf]
    %v72 = vld [vmem:[#allocation6 + $0x4] sm:$0xf]
    %v73 = vld [vmem:[#allocation6 + $0x8] sm:$0xf]
    %v74 = vld [vmem:[#allocation6 + $0xc] sm:$0xf]
    %v75 = vld [vmem:[#allocation6 + $0x10] sm:$0xf]
    %v76 = vld [vmem:[#allocation6 + $0x14] sm:$0xf]
    %v77 = vld [vmem:[#allocation6 + $0x18] sm:$0xf]
    %v78 = vld [vmem:[#allocation6 + $0x1c] sm:$0xf]
    %v79 = vld [vmem:[#allocation6 + $0x20] sm:$0xf]
    %v80 = vld [vmem:[#allocation6 + $0x24] sm:$0xf]
    %v81 = vld [vmem:[#allocation6 + $0x28] sm:$0xf]
    %v82 = vld [vmem:[#allocation6 + $0x2c] sm:$0xf]
    %v83 = vld [vmem:[#allocation6 + $0x30] sm:$0xf]
    %v84 = vld [vmem:[#allocation6 + $0x34] sm:$0xf]
    %v85 = vld [vmem:[#allocation6 + $0x38] sm:$0xf]
    %v86 = vld [vmem:[#allocation6 + $0x3c] sm:$0xf]
    %v87 = vld [vmem:[#allocation6 + $0x40] sm:$0xf]
    %v88 = vld [vmem:[#allocation6 + $0x44] sm:$0xf]
    %v89 = vld [vmem:[#allocation6 + $0x48] sm:$0xf]
    %v90 = vld [vmem:[#allocation6 + $0x4c] sm:$0xf]
    %v91 = vld [vmem:[#allocation6 + $0x50] sm:$0xf]
    %v92 = vld [vmem:[#allocation6 + $0x54] sm:$0xf]
    %v93 = vld [vmem:[#allocation6 + $0x58] sm:$0xf]
    %v94 = vld [vmem:[#allocation6 + $0x5c] sm:$0xf]
    %v95 = vld [vmem:[#allocation6 + $0x60] sm:$0xf]
    %v96 = vld [vmem:[#allocation6 + $0x64] sm:$0xf]
    %v97 = vld [vmem:[#allocation6 + $0x68] sm:$0xf]
    %v98 = vld [vmem:[#allocation6 + $0x6c] sm:$0xf]
    %v99 = vld [vmem:[#allocation6 + $0x70] sm:$0xf]
    %v100 = vld [vmem:[#allocation6 + $0x74] sm:$0xf]
    %v101 = vld [vmem:[#allocation6 + $0x78] sm:$0xf]
    %v102 = vld [vmem:[#allocation6 + $0x7c] sm:$0xf]
    %v135 = vunpack.c.l.b16 %v71
    %v136 = vunpack.c.l.b16 %v72
    %v137 = vunpack.c.l.b16 %v73
    %v138 = vunpack.c.l.b16 %v74
    %v139 = vunpack.c.l.b16 %v75
    %v140 = vunpack.c.l.b16 %v76
    %v141 = vunpack.c.l.b16 %v77
    %v142 = vunpack.c.l.b16 %v78
    %v143 = vunpack.c.l.b16 %v79
    %v144 = vunpack.c.l.b16 %v80
    %v145 = vunpack.c.l.b16 %v81
    %v146 = vunpack.c.l.b16 %v82
    %v147 = vunpack.c.l.b16 %v83
    %v148 = vunpack.c.l.b16 %v84
    %v149 = vunpack.c.l.b16 %v85
    %v150 = vunpack.c.l.b16 %v86
    %v151 = vunpack.c.l.b16 %v87
    %v152 = vunpack.c.l.b16 %v88
    %v153 = vunpack.c.l.b16 %v89
    %v154 = vunpack.c.l.b16 %v90
    %v155 = vunpack.c.l.b16 %v91
    %v156 = vunpack.c.l.b16 %v92
    %v157 = vunpack.c.l.b16 %v93
    %v158 = vunpack.c.l.b16 %v94
    %v159 = vunpack.c.l.b16 %v95
    %v160 = vunpack.c.l.b16 %v96
    %v161 = vunpack.c.l.b16 %v97
    %v162 = vunpack.c.l.b16 %v98
    %v163 = vunpack.c.l.b16 %v99
    %v164 = vunpack.c.l.b16 %v100
    %v165 = vunpack.c.l.b16 %v101
    %v166 = vunpack.c.l.b16 %v102
    %v167 = vpack.c.b16 %v136, %v135
    %v168 = vpack.c.b16 %v138, %v137
    %v169 = vpack.c.b16 %v140, %v139
    %v170 = vpack.c.b16 %v142, %v141
    %v171 = vpack.c.b16 %v144, %v143
    %v172 = vpack.c.b16 %v146, %v145
    %v173 = vpack.c.b16 %v148, %v147
    %v174 = vpack.c.b16 %v150, %v149
    %v175 = vpack.c.b16 %v152, %v151
    %v176 = vpack.c.b16 %v154, %v153
    %v177 = vpack.c.b16 %v156, %v155
    %v178 = vpack.c.b16 %v158, %v157
    %v179 = vpack.c.b16 %v160, %v159
    %v180 = vpack.c.b16 %v162, %v161
    %v181 = vpack.c.b16 %v164, %v163
    %v182 = vpack.c.b16 %v166, %v165
    %199 = vmatprep.subr.bf16.mxu0 0
    %200 = vmatpush1.bf16.msra.mxu0 %v167
    %201 = vmatprep.subr.bf16.mxu0 0
    %202 = vmatpush1.bf16.msra.mxu0 %v168
    %203 = vmatprep.subr.bf16.mxu0 0
    %204 = vmatpush1.bf16.msra.mxu0 %v169
    %205 = vmatprep.subr.bf16.mxu0 0
    %206 = vmatpush1.bf16.msra.mxu0 %v170
    %207 = vmatprep.subr.bf16.mxu0 0
    %208 = vmatpush1.bf16.msra.mxu0 %v171
    %209 = vmatprep.subr.bf16.mxu0 0
    %210 = vmatpush1.bf16.msra.mxu0 %v172
    %211 = vmatprep.subr.bf16.mxu0 0
    %212 = vmatpush1.bf16.msra.mxu0 %v173
    %213 = vmatprep.subr.bf16.mxu0 0
    %214 = vmatpush1.bf16.msra.mxu0 %v174
    %215 = vmatprep.subr.bf16.mxu0 0
    %216 = vmatpush1.bf16.msra.mxu0 %v175
    %217 = vmatprep.subr.bf16.mxu0 0
    %218 = vmatpush1.bf16.msra.mxu0 %v176
    %219 = vmatprep.subr.bf16.mxu0 0
    %220 = vmatpush1.bf16.msra.mxu0 %v177
    %221 = vmatprep.subr.bf16.mxu0 0
    %222 = vmatpush1.bf16.msra.mxu0 %v178
    %223 = vmatprep.subr.bf16.mxu0 0
    %224 = vmatpush1.bf16.msra.mxu0 %v179
    %225 = vmatprep.subr.bf16.mxu0 0
    %226 = vmatpush1.bf16.msra.mxu0 %v180
    %227 = vmatprep.subr.bf16.mxu0 0
    %228 = vmatpush1.bf16.msra.mxu0 %v181
    %229 = vmatprep.subr.bf16.mxu0 0
    %230 = vmatpush1.bf16.msra.mxu0 %v182
    %231 = vmatprep.mubr.bf16.mxu0 %v70
    %232 = vmatmul.mubr.bf16.gmra.mrb[0].mxu0 %v69
    %v233 = vpop.f32.mrb[0].mxu0
    %v234 = vadd.f32 0.0, %v233
    %v235 = vpop.f32.mrb[0].mxu0
    %v236 = vpop.f32.mrb[0].mxu0
    %v237 = vpop.f32.mrb[0].mxu0
    %238 = vdwg.mxu0
    %v239 = vadd.f32 %v66, %v234
    %240 = vst [vmem:[#allocation2] sm:$0xff] %v239
    // Predicated region
    $region38: #{two_layer_nn.1} parent=1 // pred_check
      %p241 = pneg %p61
    $region39: #{two_layer_nn.1} parent=1 // pred_check_branch
      %243 = sbr.rel (%p241) target = $region41
    $region40: #{two_layer_nn.1} parent=1 // pred_region
      %v244 = vld [vmem:[#allocation2] sm:$0xff]
      %v245 = vld [vmem:[%s2] sm:$0x1]
      %v247 = vlaneseq
      %v248 = vshrl.u32 %v247, 7
      %v249 = vsub.s32 0, %v248
      %v250 = vrot.slane %v245, %v249
      %v252 = vadd.f32 %v244, %v250
      %v253 = vmax.f32 %v252, 0.0
      %v254 = vpack.c.bf16 %v253, %v253
      %v255 = vld [vmem:[#allocation8] sm:$0xf]
      %v256 = vld [vmem:[#allocation8 + $0x4] sm:$0xf]
      %v257 = vld [vmem:[#allocation8 + $0x8] sm:$0xf]
      %v258 = vld [vmem:[#allocation8 + $0xc] sm:$0xf]
      %v259 = vld [vmem:[#allocation8 + $0x10] sm:$0xf]
      %v260 = vld [vmem:[#allocation8 + $0x14] sm:$0xf]
      %v261 = vld [vmem:[#allocation8 + $0x18] sm:$0xf]
      %v262 = vld [vmem:[#allocation8 + $0x1c] sm:$0xf]
      %v263 = vld [vmem:[#allocation8 + $0x20] sm:$0xf]
      %v264 = vld [vmem:[#allocation8 + $0x24] sm:$0xf]
      %v265 = vld [vmem:[#allocation8 + $0x28] sm:$0xf]
      %v266 = vld [vmem:[#allocation8 + $0x2c] sm:$0xf]
      %v267 = vld [vmem:[#allocation8 + $0x30] sm:$0xf]
      %v268 = vld [vmem:[#allocation8 + $0x34] sm:$0xf]
      %v269 = vld [vmem:[#allocation8 + $0x38] sm:$0xf]
      %v270 = vld [vmem:[#allocation8 + $0x3c] sm:$0xf]
      %v271 = vld [vmem:[%s4] sm:$0x1]
      %v273 = vlaneseq
      %v274 = vshrl.u32 %v273, 7
      %v275 = vsub.s32 0, %v274
      %v276 = vrot.slane %v271, %v275
      %v294 = vunpack.c.l.b16 %v255
      %v295 = vunpack.c.l.b16 %v256
      %v296 = vunpack.c.l.b16 %v257
      %v297 = vunpack.c.l.b16 %v258
      %v298 = vunpack.c.l.b16 %v259
      %v299 = vunpack.c.l.b16 %v260
      %v300 = vunpack.c.l.b16 %v261
      %v301 = vunpack.c.l.b16 %v262
      %v302 = vunpack.c.l.b16 %v263
      %v303 = vunpack.c.l.b16 %v264
      %v304 = vunpack.c.l.b16 %v265
      %v305 = vunpack.c.l.b16 %v266
      %v306 = vunpack.c.l.b16 %v267
      %v307 = vunpack.c.l.b16 %v268
      %v308 = vunpack.c.l.b16 %v269
      %v309 = vunpack.c.l.b16 %v270
      %v310 = vpack.c.b16 %v295, %v294
      %v311 = vpack.c.b16 %v297, %v296
      %v312 = vpack.c.b16 %v299, %v298
      %v313 = vpack.c.b16 %v301, %v300
      %v314 = vpack.c.b16 %v303, %v302
      %v315 = vpack.c.b16 %v305, %v304
      %v316 = vpack.c.b16 %v307, %v306
      %v317 = vpack.c.b16 %v309, %v308
      %326 = vmatprep.subr.bf16.mxu0 0
      %327 = vmatpush1.bf16.msra.mxu0 %v310
      %328 = vmatprep.subr.bf16.mxu0 0
      %329 = vmatpush1.bf16.msra.mxu0 %v311
      %330 = vmatprep.subr.bf16.mxu0 0
      %331 = vmatpush1.bf16.msra.mxu0 %v312
      %332 = vmatprep.subr.bf16.mxu0 0
      %333 = vmatpush1.bf16.msra.mxu0 %v313
      %334 = vmatprep.subr.bf16.mxu0 0
      %335 = vmatpush1.bf16.msra.mxu0 %v314
      %336 = vmatprep.subr.bf16.mxu0 0
      %337 = vmatpush1.bf16.msra.mxu0 %v315
      %338 = vmatprep.subr.bf16.mxu0 0
      %339 = vmatpush1.bf16.msra.mxu0 %v316
      %340 = vmatprep.subr.bf16.mxu0 0
      %341 = vmatpush1.bf16.msra.mxu0 %v317
      %342 = vmatprep.subr.bf16.mxu0 0
      %343 = vmatpush1.bf16.msra.mxu0 0
      %344 = vmatprep.subr.bf16.mxu0 0
      %345 = vmatpush1.bf16.msra.mxu0 0
      %346 = vmatprep.subr.bf16.mxu0 0
      %347 = vmatpush1.bf16.msra.mxu0 0
      %348 = vmatprep.subr.bf16.mxu0 0
      %349 = vmatpush1.bf16.msra.mxu0 0
      %350 = vmatprep.subr.bf16.mxu0 0
      %351 = vmatpush1.bf16.msra.mxu0 0
      %352 = vmatprep.subr.bf16.mxu0 0
      %353 = vmatpush1.bf16.msra.mxu0 0
      %354 = vmatprep.subr.bf16.mxu0 0
      %355 = vmatpush1.bf16.msra.mxu0 0
      %356 = vmatprep.subr.bf16.mxu0 0
      %357 = vmatpush1.bf16.msra.mxu0 0
      %358 = vmatprep.mubr.bf16.mxu0 0
      %359 = vmatmul.mubr.bf16.gmra.mrb[0].mxu0 %v254
      %v360 = vpop.f32.mrb[0].mxu0
      %v361 = vadd.f32 %v276, %v360
      %v362 = vpop.f32.mrb[0].mxu0
      %v363 = vpop.f32.mrb[0].mxu0
      %v364 = vpop.f32.mrb[0].mxu0
      %365 = vdwg.mxu0
      %366 = vst [vmem:[#allocation9] sm:$0xff] %v361
    $region41: #{two_layer_nn.1} parent=1 // pred_fallthru
      _
    // Predicated region
    $region42: #{two_layer_nn.1} parent=1 // pred_check
      _
    $region43: #{two_layer_nn.1} parent=1 // pred_check_branch
      %368 = sbr.rel (0) target = $region45
    $region44: #{two_layer_nn.1} parent=1 // pred_region
      %s370 = ssub.s32 128, 128
      %371 = vsyncadd [#allocation5], %s370
      %s373 = sshll.u32 [#allocation9], 4
      %s374 = int_to_ptr.vmem [resolvable:$true] %s373
      %376 = dma.vmem_to_hbm [thread:$0]  %s374, 128, %s5, [#allocation5]
    $region45: #{two_layer_nn.1} parent=1 // pred_fallthru
      _
    // Predicated region
    $region46: #{two_layer_nn.1} parent=1 // pred_check
      _
    $region47: #{two_layer_nn.1} parent=1 // pred_check_branch
      %378 = sbr.rel (0) target = $region49
    $region48: #{two_layer_nn.1} parent=1 // pred_region
      %379 = dma.done [#allocation5], 128
    $region49: #{two_layer_nn.1} parent=1 // pred_fallthru
      _
    %380 = vsyncpa [#allocation4], 1
    %381 = vsyncpa [#allocation7], 1
    %382 = vsyncpa [#allocation5], 1

</llo_original>
